<compile_context>
chip_gen: v6e
topology: v6e:2x2x1
jax: 0.10.0
libtpu: 0.0.40
codegen_flags: <defaults>
</compile_context>

<pallas_src>
import functools

import jax
import jax.numpy as jnp
from jax import lax
from jax.experimental import pallas as pl
from jax.experimental.pallas import tpu as pltpu


def _round_up(x, m):
    return ((x + m - 1) // m) * m


def _rcnn_post_process_kernel(
    boxes_ref, scores_ref, deltas_ref, out_ref, keys_ref, alive_ref, *,
    num_classes, n_valid, post_nms_top_k, topk_pad, chunk,
    nms_threshold, box_filter_threshold,
    fixed_h, fixed_w, delta_mean, delta_std, box_scale,
):
    C = num_classes
    C1 = C + 1
    Npad = scores_ref.shape[2]

    boxes = boxes_ref[0] * box_scale        # (4, Npad) dequantized proposals
    scores = scores_ref[0]                  # (C1, Npad)
    deltas = deltas_ref[0]                  # (4*C1, Npad), row = comp*C1 + class

    x1 = boxes[0:1, :]
    y1 = boxes[1:2, :]
    x2 = boxes[2:3, :]
    y2 = boxes[3:4, :]

    # ---- argmax over foreground class scores (channel 0 = background) -------
    fg = scores[1:, :]                                             # (C, Npad)
    max_fg = jnp.max(fg, axis=0, keepdims=True)                    # (1, Npad)
    iota_c = lax.broadcasted_iota(jnp.int32, fg.shape, 0)
    cls_fg = jnp.min(jnp.where(fg >= max_fg, iota_c, C),
                     axis=0, keepdims=True)                        # first-max, (1, Npad)
    full_cls = cls_fg + 1                                          # channel index
    score = max_fg                                                 # (1, Npad)

    # ---- select the deltas of the argmax class (sublane reduce over C1) -----
    iota_ch = lax.broadcasted_iota(jnp.int32, (C1, Npad), 0)
    onehot = (iota_ch == full_cls).astype(jnp.float32)             # (C1, Npad)

    def sel_comp(comp):
        slab = deltas[comp * C1:(comp + 1) * C1, :]                # (C1, Npad)
        return jnp.sum(slab * onehot, axis=0, keepdims=True)       # (1, Npad)

    dx = sel_comp(0) * delta_std[0] + delta_mean[0]
    dy = sel_comp(1) * delta_std[1] + delta_mean[1]
    dw = sel_comp(2) * delta_std[2] + delta_mean[2]
    dh = sel_comp(3) * delta_std[3] + delta_mean[3]

    # ---- non-linear transform: deltas -> image coordinates ------------------
    w = x2 - x1
    h = y2 - y1
    cx = x1 + 0.5 * w
    cy = y1 + 0.5 * h
    pcx = dx * w + cx
    pcy = dy * h + cy
    pw = jnp.exp(dw) * w
    ph = jnp.exp(dh) * h
    nx1 = jnp.clip(pcx - 0.5 * pw, 0.0, fixed_w - 1.0)
    ny1 = jnp.clip(pcy - 0.5 * ph, 0.0, fixed_h - 1.0)
    nx2 = jnp.clip(pcx + 0.5 * pw, 0.0, fixed_w - 1.0)
    ny2 = jnp.clip(pcy + 0.5 * ph, 0.0, fixed_h - 1.0)

    clsf = cls_fg.astype(jnp.float32)                              # (1, Npad)
    area = (nx2 - nx1) * (ny2 - ny1)                               # (1, Npad)

    iota_n = lax.broadcasted_iota(jnp.int32, (1, Npad), 1)
    valid = (score >= box_filter_threshold) & (iota_n < n_valid)   # (1, Npad) bool

    # Fused per-box feature matrix: one (8, Npad) slab, one masked reduce per pick.
    zero_row = jnp.zeros((1, Npad), jnp.float32)
    feats = jnp.concatenate(
        [nx1, ny1, nx2, ny2, score, clsf, area, zero_row], axis=0)  # (8, Npad)

    # ---- packed sort keys: single fused max+argmax per NMS iteration --------
    # key = (monotone(score) with low idx_bits cleared) | (MASK - lane_idx)
    # -> jnp.max gives the best score AND a unique winner lane; ties (to within
    #    the cleared mantissa bits) break toward the smaller index.
    idx_bits = max(1, (Npad - 1).bit_length())
    mask = (1 << idx_bits) - 1
    dead = int(jnp.iinfo(jnp.int32).min)                           # suppressed/invalid

    sbits = pltpu.bitcast(score, jnp.int32)                        # (1, Npad)
    fkey = sbits ^ jnp.where(sbits < 0, jnp.int32(0x7FFFFFFF), jnp.int32(0))
    packed = (fkey & jnp.int32(~mask)) | (jnp.int32(mask) - iota_n)
    keys0 = jnp.where(valid, packed, jnp.int32(dead))              # (1, Npad) int32

    keys_ref[...] = keys0
    alive_ref[0] = (jnp.max(keys0) > jnp.int32(dead)).astype(jnp.int32)
    out_ref[0] = jnp.full((8, topk_pad), -1.0, jnp.float32)

    # Hoisted loop-invariant iota over output columns.
    iota_out = lax.broadcasted_iota(jnp.int32, (8, topk_pad), 1)   # (8, topk_pad)
    n_chunks = (post_nms_top_k + chunk - 1) // chunk

    # ---- greedy class-aware NMS: chunked + early-exit + unrolled body -------
    @pl.loop(0, n_chunks)
    def _chunk_loop(c):
        @pl.when(alive_ref[0] > 0)
        def _():
            keys = keys_ref[...]                                   # (1, Npad) int32
            out_acc = out_ref[0]                                   # (8, topk_pad)
            any_alive = jnp.bool_(True)
            for j in range(chunk):                                 # python-unrolled
                k = c * chunk + j
                pk = jnp.max(keys)                                 # 1 full reduce
                any_alive = pk > jnp.int32(dead)
                sel = keys == pk                                   # unique winner lane
                selc = sel.astype(jnp.float32)
                picked = jnp.sum(feats * selc, axis=1, keepdims=True)   # (8, 1)

                px1 = picked[0:1, :]
                py1 = picked[1:2, :]
                px2 = picked[2:3, :]
                py2 = picked[3:4, :]
                pcls = picked[5:6, :]
                parea = picked[6:7, :]

                ix1 = jnp.maximum(nx1, px1)
                iy1 = jnp.maximum(ny1, py1)
                ix2 = jnp.minimum(nx2, px2)
                iy2 = jnp.minimum(ny2, py2)
                inter = jnp.maximum(ix2 - ix1, 0.0) * jnp.maximum(iy2 - iy1, 0.0)
                union = jnp.maximum(area + parea - inter, 1e-6)
                iou = inter * pl.reciprocal(union, approx=True)    # EUP, not VPU
                suppress = (iou > nms_threshold) & (clsf == pcls)  # class-aware

                # Suppressed + picked lanes die; if nothing was alive, keys were
                # already all-dead so this is a no-op.
                keys = jnp.where(suppress | sel, jnp.int32(dead), keys)

                col_hit = (iota_out == k) & any_alive
                out_acc = jnp.where(col_hit, picked, out_acc)
            keys_ref[...] = keys
            out_ref[0] = out_acc
            alive_ref[0] = any_alive.astype(jnp.int32)


def rcnn_post_process(
    boxes_list, scores, deltas, *,
    image_size=(1024, 1024), nms_threshold=0.3, box_filter_threshold=0.1,
    num_classes=1, post_nms_top_k=100,
    delta_mean=(0.0, 0.0, 0.0, 0.0), delta_std=(1.0, 1.0, 1.0, 1.0),
    nms_chunk=4,
):
    B = len(boxes_list)
    N = boxes_list[0].shape[0]
    C1 = num_classes + 1
    Npad = _round_up(max(N, 128), 128)
    chunk = max(1, min(int(nms_chunk), int(post_nms_top_k)))
    TKpad = _round_up(max(_round_up(post_nms_top_k, chunk), 128), 128)

    # Glue: qint16 quantization of proposals (scale 0.25, zero_point 0), collapse
    # NCHW 1x1 spatial dims, transpose to lane-major layout, pad N to 128-multiple.
    box_scale = 0.25
    boxes_q = jnp.stack([
        jnp.clip(jnp.round(b / box_scale), -32768.0, 32767.0) for b in boxes_list
    ]).astype(jnp.float32)                                        # (B, N, 4)
    boxes_t = jnp.transpose(boxes_q, (0, 2, 1))                   # (B, 4, N)
    scores_t = jnp.transpose(
        scores.reshape(B, N, C1).astype(jnp.float32), (0, 2, 1))  # (B, C1, N)
    deltas_t = jnp.transpose(
        deltas.reshape(B, N, C1, 4).astype(jnp.float32),
        (0, 3, 2, 1)).reshape(B, 4 * C1, N)                       # (B, 4*C1, N)

    pad = Npad - N
    if pad:
        boxes_t = jnp.pad(boxes_t, ((0, 0), (0, 0), (0, pad)))
        scores_t = jnp.pad(scores_t, ((0, 0), (0, 0), (0, pad)))
        deltas_t = jnp.pad(deltas_t, ((0, 0), (0, 0), (0, pad)))

    kernel = functools.partial(
        _rcnn_post_process_kernel,
        num_classes=num_classes,
        n_valid=N,
        post_nms_top_k=post_nms_top_k,
        topk_pad=TKpad,
        chunk=chunk,
        nms_threshold=float(nms_threshold),
        box_filter_threshold=float(box_filter_threshold),
        fixed_h=float(image_size[0]),
        fixed_w=float(image_size[1]),
        delta_mean=tuple(float(v) for v in delta_mean),
        delta_std=tuple(float(v) for v in delta_std),
        box_scale=box_scale,
    )

    out_t = pl.pallas_call(
        kernel,
        out_shape=jax.ShapeDtypeStruct((B, 8, TKpad), jnp.float32),
        grid=(B,),
        in_specs=[
            pl.BlockSpec((1, 4, Npad), lambda b: (b, 0, 0)),
            pl.BlockSpec((1, C1, Npad), lambda b: (b, 0, 0)),
            pl.BlockSpec((1, 4 * C1, Npad), lambda b: (b, 0, 0)),
        ],
        out_specs=pl.BlockSpec((1, 8, TKpad), lambda b: (b, 0, 0)),
        scratch_shapes=[
            pltpu.VMEM((1, Npad), jnp.int32),   # packed NMS keys (alive state)
            pltpu.SMEM((1,), jnp.int32),        # early-exit flag
        ],
        compiler_params=pltpu.CompilerParams(dimension_semantics=("parallel",)),
    )(boxes_t, scores_t, deltas_t)

    # (B, 8, TKpad) -> (B, post_nms_top_k, 6) = [x1, y1, x2, y2, score, class]
    return jnp.transpose(out_t, (0, 2, 1))[:, :post_nms_top_k, :6]


if __name__ == "__main__":
    key = jax.random.PRNGKey(0)
    B = 2                 # num_batch
    N = 32                # proposals per image
    num_classes = 4
    post_nms_top_k = 8
    image_size = (128, 128)

    k1, k2, k3, k4 = jax.random.split(key, 4)
    xy1 = jax.random.uniform(k1, (B, N, 2), minval=0.0, maxval=80.0)
    wh = jax.random.uniform(k2, (B, N, 2), minval=4.0, maxval=40.0)
    boxes_all = jnp.concatenate([xy1, xy1 + wh], axis=-1)           # (B, N, 4)
    boxes_list = [boxes_all[b] for b in range(B)]                   # list of (N, 4)

    scores = jax.random.uniform(k3, (B * N, num_classes + 1, 1, 1), dtype=jnp.float32)
    deltas = 0.2 * jax.random.normal(k4, (B * N, (num_classes + 1) * 4, 1, 1),
                                     dtype=jnp.float32)

    out = rcnn_post_process(
        boxes_list, scores, deltas,
        image_size=image_size,
        nms_threshold=0.5,
        box_filter_threshold=0.05,
        num_classes=num_classes,
        post_nms_top_k=post_nms_top_k,
        delta_mean=(0.0, 0.0, 0.0, 0.0),
        delta_std=(0.1, 0.1, 0.2, 0.2),
    )
    out = jax.block_until_ready(out)
    assert out.shape == (B, post_nms_top_k, 6) and out.dtype == jnp.float32
    print("KERNEL_OK")
</pallas_src>

<mosaic_0001>
module attributes {stable_mosaic.version = 11 : i64} {
  func.func @_rcnn_post_process_kernel(%arg0: i32, %arg1: memref<1x4x128xf32, #tpu.memory_space<vmem>>, %arg2: memref<1x5x128xf32, #tpu.memory_space<vmem>>, %arg3: memref<1x20x128xf32, #tpu.memory_space<vmem>>, %arg4: memref<1x8x128xf32, #tpu.memory_space<vmem>>, %arg5: memref<1x128xi32, #tpu.memory_space<vmem>>, %arg6: memref<1xi32, #tpu.memory_space<smem>>) attributes {dimension_semantics = [#tpu.dimension_semantics<parallel>], iteration_bounds = array<i64: 2>, scalar_prefetch = 0 : i64, scratch_operands = 2 : i64, tpu.core_type = #tpu.core_type<tc>, window_params = [{transform_indices = @transform_0, window_bounds = array<i64: 1, 4, 128>}, {transform_indices = @transform_1, window_bounds = array<i64: 1, 5, 128>}, {transform_indices = @transform_2, window_bounds = array<i64: 1, 20, 128>}, {transform_indices = @transform_3, window_bounds = array<i64: 1, 8, 128>}]} {
    %c0 = arith.constant 0 : index
    %c0_0 = arith.constant 0 : index
    %c0_1 = arith.constant 0 : index
    %0 = vector.load %arg1[%c0, %c0_0, %c0_1] : memref<1x4x128xf32, #tpu.memory_space<vmem>>, vector<1x4x128xf32>
    %1 = vector.shape_cast %0 : vector<1x4x128xf32> to vector<4x128xf32>
    %cst = arith.constant 2.500000e-01 : f32
    %2 = vector.broadcast %cst : f32 to vector<4x128xf32>
    %3 = arith.mulf %1, %2 : vector<4x128xf32>
    %c0_2 = arith.constant 0 : index
    %c0_3 = arith.constant 0 : index
    %c0_4 = arith.constant 0 : index
    %4 = vector.load %arg2[%c0_2, %c0_3, %c0_4] : memref<1x5x128xf32, #tpu.memory_space<vmem>>, vector<1x5x128xf32>
    %5 = vector.shape_cast %4 : vector<1x5x128xf32> to vector<5x128xf32>
    %c0_5 = arith.constant 0 : index
    %c0_6 = arith.constant 0 : index
    %c0_7 = arith.constant 0 : index
    %6 = vector.load %arg3[%c0_5, %c0_6, %c0_7] : memref<1x20x128xf32, #tpu.memory_space<vmem>>, vector<1x20x128xf32>
    %7 = vector.shape_cast %6 : vector<1x20x128xf32> to vector<20x128xf32>
    %8 = vector.extract_strided_slice %3 {offsets = [0, 0], sizes = [1, 128], strides = [1, 1]} : vector<4x128xf32> to vector<1x128xf32>
    %9 = vector.extract_strided_slice %3 {offsets = [1, 0], sizes = [1, 128], strides = [1, 1]} : vector<4x128xf32> to vector<1x128xf32>
    %10 = vector.extract_strided_slice %3 {offsets = [2, 0], sizes = [1, 128], strides = [1, 1]} : vector<4x128xf32> to vector<1x128xf32>
    %11 = vector.extract_strided_slice %3 {offsets = [3, 0], sizes = [1, 128], strides = [1, 1]} : vector<4x128xf32> to vector<1x128xf32>
    %12 = vector.extract_strided_slice %5 {offsets = [1, 0], sizes = [4, 128], strides = [1, 1]} : vector<5x128xf32> to vector<4x128xf32>
    %cst_8 = arith.constant dense<0xFF800000> : vector<128xf32>
    %13 = vector.multi_reduction <maximumf>, %12, %cst_8 [0] : vector<4x128xf32> to vector<128xf32>
    %14 = vector.shape_cast %13 : vector<128xf32> to vector<1x128xf32>
    %15 = tpu.iota {dimensions = array<i32: 0>} : vector<4x128xi32>
    %16 = vector.broadcast %14 : vector<1x128xf32> to vector<4x128xf32>
    %17 = arith.cmpf oge, %12, %16 : vector<4x128xf32>
    %c4_i32 = arith.constant 4 : i32
    %18 = vector.broadcast %c4_i32 : i32 to vector<4x128xi32>
    %19 = arith.select %17, %15, %18 : vector<4x128xi1>, vector<4x128xi32>
    %cst_9 = arith.constant dense<2147483647> : vector<128xi32>
    %20 = vector.multi_reduction <minsi>, %19, %cst_9 [0] : vector<4x128xi32> to vector<128xi32>
    %21 = vector.shape_cast %20 : vector<128xi32> to vector<1x128xi32>
    %c1_i32 = arith.constant 1 : i32
    %22 = vector.broadcast %c1_i32 : i32 to vector<1x128xi32>
    %23 = arith.addi %21, %22 : vector<1x128xi32>
    %24 = tpu.iota {dimensions = array<i32: 0>} : vector<5x128xi32>
    %25 = vector.broadcast %23 : vector<1x128xi32> to vector<5x128xi32>
    %26 = arith.cmpi eq, %24, %25 : vector<5x128xi32>
    %27 = arith.extui %26 : vector<5x128xi1> to vector<5x128xi32>
    %28 = arith.sitofp %27 : vector<5x128xi32> to vector<5x128xf32>
    %29 = vector.extract_strided_slice %7 {offsets = [0, 0], sizes = [5, 128], strides = [1, 1]} : vector<20x128xf32> to vector<5x128xf32>
    %30 = arith.mulf %29, %28 : vector<5x128xf32>
    %cst_10 = arith.constant dense<0.000000e+00> : vector<128xf32>
    %31 = vector.multi_reduction <add>, %30, %cst_10 [0] : vector<5x128xf32> to vector<128xf32>
    %32 = vector.shape_cast %31 : vector<128xf32> to vector<1x128xf32>
    %cst_11 = arith.constant 1.000000e-01 : f32
    %33 = vector.broadcast %cst_11 : f32 to vector<1x128xf32>
    %34 = arith.mulf %32, %33 : vector<1x128xf32>
    %cst_12 = arith.constant 0.000000e+00 : f32
    %35 = vector.broadcast %cst_12 : f32 to vector<1x128xf32>
    %36 = arith.addf %34, %35 : vector<1x128xf32>
    %37 = vector.extract_strided_slice %7 {offsets = [5, 0], sizes = [5, 128], strides = [1, 1]} : vector<20x128xf32> to vector<5x128xf32>
    %38 = arith.mulf %37, %28 : vector<5x128xf32>
    %cst_13 = arith.constant dense<0.000000e+00> : vector<128xf32>
    %39 = vector.multi_reduction <add>, %38, %cst_13 [0] : vector<5x128xf32> to vector<128xf32>
    %40 = vector.shape_cast %39 : vector<128xf32> to vector<1x128xf32>
    %cst_14 = arith.constant 1.000000e-01 : f32
    %41 = vector.broadcast %cst_14 : f32 to vector<1x128xf32>
    %42 = arith.mulf %40, %41 : vector<1x128xf32>
    %cst_15 = arith.constant 0.000000e+00 : f32
    %43 = vector.broadcast %cst_15 : f32 to vector<1x128xf32>
    %44 = arith.addf %42, %43 : vector<1x128xf32>
    %45 = vector.extract_strided_slice %7 {offsets = [10, 0], sizes = [5, 128], strides = [1, 1]} : vector<20x128xf32> to vector<5x128xf32>
    %46 = arith.mulf %45, %28 : vector<5x128xf32>
    %cst_16 = arith.constant dense<0.000000e+00> : vector<128xf32>
    %47 = vector.multi_reduction <add>, %46, %cst_16 [0] : vector<5x128xf32> to vector<128xf32>
    %48 = vector.shape_cast %47 : vector<128xf32> to vector<1x128xf32>
    %cst_17 = arith.constant 2.000000e-01 : f32
    %49 = vector.broadcast %cst_17 : f32 to vector<1x128xf32>
    %50 = arith.mulf %48, %49 : vector<1x128xf32>
    %cst_18 = arith.constant 0.000000e+00 : f32
    %51 = vector.broadcast %cst_18 : f32 to vector<1x128xf32>
    %52 = arith.addf %50, %51 : vector<1x128xf32>
    %53 = vector.extract_strided_slice %7 {offsets = [15, 0], sizes = [5, 128], strides = [1, 1]} : vector<20x128xf32> to vector<5x128xf32>
    %54 = arith.mulf %53, %28 : vector<5x128xf32>
    %cst_19 = arith.constant dense<0.000000e+00> : vector<128xf32>
    %55 = vector.multi_reduction <add>, %54, %cst_19 [0] : vector<5x128xf32> to vector<128xf32>
    %56 = vector.shape_cast %55 : vector<128xf32> to vector<1x128xf32>
    %cst_20 = arith.constant 2.000000e-01 : f32
    %57 = vector.broadcast %cst_20 : f32 to vector<1x128xf32>
    %58 = arith.mulf %56, %57 : vector<1x128xf32>
    %cst_21 = arith.constant 0.000000e+00 : f32
    %59 = vector.broadcast %cst_21 : f32 to vector<1x128xf32>
    %60 = arith.addf %58, %59 : vector<1x128xf32>
    %61 = arith.subf %10, %8 : vector<1x128xf32>
    %62 = arith.subf %11, %9 : vector<1x128xf32>
    %cst_22 = arith.constant 5.000000e-01 : f32
    %63 = vector.broadcast %cst_22 : f32 to vector<1x128xf32>
    %64 = arith.mulf %63, %61 : vector<1x128xf32>
    %65 = arith.addf %8, %64 : vector<1x128xf32>
    %cst_23 = arith.constant 5.000000e-01 : f32
    %66 = vector.broadcast %cst_23 : f32 to vector<1x128xf32>
    %67 = arith.mulf %66, %62 : vector<1x128xf32>
    %68 = arith.addf %9, %67 : vector<1x128xf32>
    %69 = arith.mulf %36, %61 : vector<1x128xf32>
    %70 = arith.addf %69, %65 : vector<1x128xf32>
    %71 = arith.mulf %44, %62 : vector<1x128xf32>
    %72 = arith.addf %71, %68 : vector<1x128xf32>
    %73 = math.exp %52 : vector<1x128xf32>
    %74 = arith.mulf %73, %61 : vector<1x128xf32>
    %75 = math.exp %60 : vector<1x128xf32>
    %76 = arith.mulf %75, %62 : vector<1x128xf32>
    %cst_24 = arith.constant 5.000000e-01 : f32
    %77 = vector.broadcast %cst_24 : f32 to vector<1x128xf32>
    %78 = arith.mulf %77, %74 : vector<1x128xf32>
    %79 = arith.subf %70, %78 : vector<1x128xf32>
    %cst_25 = arith.constant 0.000000e+00 : f32
    %cst_26 = arith.constant 1.270000e+02 : f32
    %80 = vector.broadcast %cst_25 : f32 to vector<1x128xf32>
    %81 = arith.maximumf %80, %79 : vector<1x128xf32>
    %82 = vector.broadcast %cst_26 : f32 to vector<1x128xf32>
    %83 = arith.minimumf %82, %81 : vector<1x128xf32>
    %cst_27 = arith.constant 5.000000e-01 : f32
    %84 = vector.broadcast %cst_27 : f32 to vector<1x128xf32>
    %85 = arith.mulf %84, %76 : vector<1x128xf32>
    %86 = arith.subf %72, %85 : vector<1x128xf32>
    %cst_28 = arith.constant 0.000000e+00 : f32
    %cst_29 = arith.constant 1.270000e+02 : f32
    %87 = vector.broadcast %cst_28 : f32 to vector<1x128xf32>
    %88 = arith.maximumf %87, %86 : vector<1x128xf32>
    %89 = vector.broadcast %cst_29 : f32 to vector<1x128xf32>
    %90 = arith.minimumf %89, %88 : vector<1x128xf32>
    %cst_30 = arith.constant 5.000000e-01 : f32
    %91 = vector.broadcast %cst_30 : f32 to vector<1x128xf32>
    %92 = arith.mulf %91, %74 : vector<1x128xf32>
    %93 = arith.addf %70, %92 : vector<1x128xf32>
    %cst_31 = arith.constant 0.000000e+00 : f32
    %cst_32 = arith.constant 1.270000e+02 : f32
    %94 = vector.broadcast %cst_31 : f32 to vector<1x128xf32>
    %95 = arith.maximumf %94, %93 : vector<1x128xf32>
    %96 = vector.broadcast %cst_32 : f32 to vector<1x128xf32>
    %97 = arith.minimumf %96, %95 : vector<1x128xf32>
    %cst_33 = arith.constant 5.000000e-01 : f32
    %98 = vector.broadcast %cst_33 : f32 to vector<1x128xf32>
    %99 = arith.mulf %98, %76 : vector<1x128xf32>
    %100 = arith.addf %72, %99 : vector<1x128xf32>
    %cst_34 = arith.constant 0.000000e+00 : f32
    %cst_35 = arith.constant 1.270000e+02 : f32
    %101 = vector.broadcast %cst_34 : f32 to vector<1x128xf32>
    %102 = arith.maximumf %101, %100 : vector<1x128xf32>
    %103 = vector.broadcast %cst_35 : f32 to vector<1x128xf32>
    %104 = arith.minimumf %103, %102 : vector<1x128xf32>
    %105 = arith.sitofp %21 : vector<1x128xi32> to vector<1x128xf32>
    %106 = arith.subf %97, %83 : vector<1x128xf32>
    %107 = arith.subf %104, %90 : vector<1x128xf32>
    %108 = arith.mulf %106, %107 : vector<1x128xf32>
    %109 = tpu.iota {dimensions = array<i32: 1>} : vector<1x128xi32>
    %cst_36 = arith.constant 5.000000e-02 : f32
    %110 = vector.broadcast %cst_36 : f32 to vector<1x128xf32>
    %111 = arith.cmpf oge, %14, %110 : vector<1x128xf32>
    %c32_i32 = arith.constant 32 : i32
    %112 = vector.broadcast %c32_i32 : i32 to vector<1x128xi32>
    %113 = arith.cmpi slt, %109, %112 : vector<1x128xi32>
    %114 = arith.andi %111, %113 : vector<1x128xi1>
    %cst_37 = arith.constant 0.000000e+00 : f32
    %115 = vector.broadcast %cst_37 : f32 to vector<1x128xf32>
    %116 = tpu.concatenate %83, %90, %97, %104, %14, %105, %108, %115 in 0 : vector<1x128xf32>, vector<1x128xf32>, vector<1x128xf32>, vector<1x128xf32>, vector<1x128xf32>, vector<1x128xf32>, vector<1x128xf32>, vector<1x128xf32> -> vector<8x128xf32>
    %117 = tpu.bitcast %14 : vector<1x128xf32> -> vector<1x128xi32>
    %c0_i32 = arith.constant 0 : i32
    %118 = vector.broadcast %c0_i32 : i32 to vector<1x128xi32>
    %119 = arith.cmpi slt, %117, %118 : vector<1x128xi32>
    %c2147483647_i32 = arith.constant 2147483647 : i32
    %c0_i32_38 = arith.constant 0 : i32
    %120 = vector.broadcast %c2147483647_i32 : i32 to vector<1x128xi32>
    %121 = vector.broadcast %c0_i32_38 : i32 to vector<1x128xi32>
    %122 = arith.select %119, %120, %121 : vector<1x128xi1>, vector<1x128xi32>
    %123 = arith.xori %117, %122 : vector<1x128xi32>
    %c-128_i32 = arith.constant -128 : i32
    %124 = vector.broadcast %c-128_i32 : i32 to vector<1x128xi32>
    %125 = arith.andi %123, %124 : vector<1x128xi32>
    %c127_i32 = arith.constant 127 : i32
    %126 = vector.broadcast %c127_i32 : i32 to vector<1x128xi32>
    %127 = arith.subi %126, %109 : vector<1x128xi32>
    %128 = arith.ori %125, %127 : vector<1x128xi32>
    %c-2147483648_i32 = arith.constant -2147483648 : i32
    %129 = vector.broadcast %c-2147483648_i32 : i32 to vector<1x128xi32>
    %130 = arith.select %114, %128, %129 : vector<1x128xi1>, vector<1x128xi32>
    %c0_39 = arith.constant 0 : index
    %c0_40 = arith.constant 0 : index
    %131 = vector.load %arg5[%c0_39, %c0_40] : memref<1x128xi32, #tpu.memory_space<vmem>>, vector<1x128xi32>
    tpu.vector_store %arg5[%c0_39, %c0_40], %130 {strides = array<i32>} : memref<1x128xi32, #tpu.memory_space<vmem>>, vector<1x128xi32>,
    %132 = vector.shape_cast %130 : vector<1x128xi32> to vector<1x1x128xi32>
    %cst_41 = arith.constant dense<-2147483648> : vector<1xi32>
    %133 = vector.multi_reduction <maxsi>, %132, %cst_41 [1, 2] : vector<1x1x128xi32> to vector<1xi32>
    %134 = vector.shape_cast %133 : vector<1xi32> to vector<1x1x1xi32>
    %135 = vector.extract %134[0, 0, 0] : i32 from vector<1x1x1xi32>
    %c-2147483648_i32_42 = arith.constant -2147483648 : i32
    %136 = arith.cmpi sgt, %135, %c-2147483648_i32_42 : i32
    %137 = arith.extui %136 : i1 to i32
    %c0_43 = arith.constant 0 : index
    %138 = memref.load %arg6[%c0_43] : memref<1xi32, #tpu.memory_space<smem>>
    memref.store %137, %arg6[%c0_43] : memref<1xi32, #tpu.memory_space<smem>>
    %cst_44 = arith.constant -1.000000e+00 : f32
    %139 = vector.broadcast %cst_44 : f32 to vector<8x128xf32>
    %c0_45 = arith.constant 0 : index
    %c0_46 = arith.constant 0 : index
    %c0_47 = arith.constant 0 : index
    %140 = vector.load %arg4[%c0_45, %c0_46, %c0_47] : memref<1x8x128xf32, #tpu.memory_space<vmem>>, vector<1x8x128xf32>
    %141 = vector.shape_cast %140 : vector<1x8x128xf32> to vector<8x128xf32>
    %142 = vector.shape_cast %139 : vector<8x128xf32> to vector<1x8x128xf32>
    tpu.vector_store %arg4[%c0_45, %c0_46, %c0_47], %142 {strides = array<i32>} : memref<1x8x128xf32, #tpu.memory_space<vmem>>, vector<1x8x128xf32>,
    %143 = tpu.iota {dimensions = array<i32: 1>} : vector<8x128xi32>
    %c0_i32_48 = arith.constant 0 : i32
    %c2_i32 = arith.constant 2 : i32
    %144 = arith.addi %c0_i32_48, %c2_i32 : i32
    %c1_i32_49 = arith.constant 1 : i32
    scf.for %arg7 = %c0_i32_48 to %144 step %c1_i32_49  : i32 {
      %c1_i32_51 = arith.constant 1 : i32
      %145 = arith.muli %arg7, %c1_i32_51 : i32
      %c0_i32_52 = arith.constant 0 : i32
      %146 = arith.addi %c0_i32_52, %145 : i32
      %c0_53 = arith.constant 0 : index
      %147 = memref.load %arg6[%c0_53] : memref<1xi32, #tpu.memory_space<smem>>
      %c0_i32_54 = arith.constant 0 : i32
      %148 = arith.cmpi sgt, %147, %c0_i32_54 : i32
      %149 = arith.extui %148 : i1 to i32
      %c0_i32_55 = arith.constant 0 : i32
      %150 = arith.cmpi ne, %149, %c0_i32_55 : i32
      scf.if %150 {
        %c0_56 = arith.constant 0 : index
        %c0_57 = arith.constant 0 : index
        %151 = vector.load %arg5[%c0_56, %c0_57] : memref<1x128xi32, #tpu.memory_space<vmem>>, vector<1x128xi32>
        %c0_58 = arith.constant 0 : index
        %c0_59 = arith.constant 0 : index
        %c0_60 = arith.constant 0 : index
        %152 = vector.load %arg4[%c0_58, %c0_59, %c0_60] : memref<1x8x128xf32, #tpu.memory_space<vmem>>, vector<1x8x128xf32>
        %153 = vector.shape_cast %152 : vector<1x8x128xf32> to vector<8x128xf32>
        %c4_i32_61 = arith.constant 4 : i32
        %154 = arith.muli %146, %c4_i32_61 : i32
        %c0_i32_62 = arith.constant 0 : i32
        %155 = arith.addi %154, %c0_i32_62 : i32
        %156 = vector.shape_cast %151 : vector<1x128xi32> to vector<1x1x128xi32>
        %cst_63 = arith.constant dense<-2147483648> : vector<1xi32>
        %157 = vector.multi_reduction <maxsi>, %156, %cst_63 [1, 2] : vector<1x1x128xi32> to vector<1xi32>
        %158 = vector.shape_cast %157 : vector<1xi32> to vector<1x1x1xi32>
        %159 = vector.extract %158[0, 0, 0] : i32 from vector<1x1x1xi32>
        %c-2147483648_i32_64 = arith.constant -2147483648 : i32
        %160 = arith.cmpi sgt, %159, %c-2147483648_i32_64 : i32
        %161 = vector.broadcast %159 : i32 to vector<1x128xi32>
        %162 = arith.cmpi eq, %151, %161 : vector<1x128xi32>
        %163 = arith.extui %162 : vector<1x128xi1> to vector<1x128xi32>
        %164 = arith.sitofp %163 : vector<1x128xi32> to vector<1x128xf32>
        %165 = vector.broadcast %164 : vector<1x128xf32> to vector<8x128xf32>
        %166 = arith.mulf %116, %165 : vector<8x128xf32>
        %cst_65 = arith.constant dense<0.000000e+00> : vector<8xf32>
        %167 = vector.multi_reduction <add>, %166, %cst_65 [1] : vector<8x128xf32> to vector<8xf32>
        %168 = vector.shape_cast %167 : vector<8xf32> to vector<8x1xf32>
        %169 = vector.extract_strided_slice %168 {offsets = [0, 0], sizes = [1, 1], strides = [1, 1]} : vector<8x1xf32> to vector<1x1xf32>
        %170 = vector.extract_strided_slice %168 {offsets = [1, 0], sizes = [1, 1], strides = [1, 1]} : vector<8x1xf32> to vector<1x1xf32>
        %171 = vector.extract_strided_slice %168 {offsets = [2, 0], sizes = [1, 1], strides = [1, 1]} : vector<8x1xf32> to vector<1x1xf32>
        %172 = vector.extract_strided_slice %168 {offsets = [3, 0], sizes = [1, 1], strides = [1, 1]} : vector<8x1xf32> to vector<1x1xf32>
        %173 = vector.extract_strided_slice %168 {offsets = [5, 0], sizes = [1, 1], strides = [1, 1]} : vector<8x1xf32> to vector<1x1xf32>
        %174 = vector.extract_strided_slice %168 {offsets = [6, 0], sizes = [1, 1], strides = [1, 1]} : vector<8x1xf32> to vector<1x1xf32>
        %175 = vector.broadcast %169 : vector<1x1xf32> to vector<1x128xf32>
        %176 = arith.maximumf %83, %175 : vector<1x128xf32>
        %177 = vector.broadcast %170 : vector<1x1xf32> to vector<1x128xf32>
        %178 = arith.maximumf %90, %177 : vector<1x128xf32>
        %179 = vector.broadcast %171 : vector<1x1xf32> to vector<1x128xf32>
        %180 = arith.minimumf %97, %179 : vector<1x128xf32>
        %181 = vector.broadcast %172 : vector<1x1xf32> to vector<1x128xf32>
        %182 = arith.minimumf %104, %181 : vector<1x128xf32>
        %183 = arith.subf %180, %176 : vector<1x128xf32>
        %cst_66 = arith.constant 0.000000e+00 : f32
        %184 = vector.broadcast %cst_66 : f32 to vector<1x128xf32>
        %185 = arith.maximumf %183, %184 : vector<1x128xf32>
        %186 = arith.subf %182, %178 : vector<1x128xf32>
        %cst_67 = arith.constant 0.000000e+00 : f32
        %187 = vector.broadcast %cst_67 : f32 to vector<1x128xf32>
        %188 = arith.maximumf %186, %187 : vector<1x128xf32>
        %189 = arith.mulf %185, %188 : vector<1x128xf32>
        %190 = vector.broadcast %174 : vector<1x1xf32> to vector<1x128xf32>
        %191 = arith.addf %108, %190 : vector<1x128xf32>
        %192 = arith.subf %191, %189 : vector<1x128xf32>
        %cst_68 = arith.constant 9.99999997E-7 : f32
        %193 = vector.broadcast %cst_68 : f32 to vector<1x128xf32>
        %194 = arith.maximumf %192, %193 : vector<1x128xf32>
        %195 = tpu.reciprocal %194 {approx = true} : vector<1x128xf32> -> vector<1x128xf32>
        %196 = arith.mulf %189, %195 : vector<1x128xf32>
        %cst_69 = arith.constant 5.000000e-01 : f32
        %197 = vector.broadcast %cst_69 : f32 to vector<1x128xf32>
        %198 = arith.cmpf ogt, %196, %197 : vector<1x128xf32>
        %199 = vector.broadcast %173 : vector<1x1xf32> to vector<1x128xf32>
        %200 = arith.cmpf oeq, %105, %199 : vector<1x128xf32>
        %201 = arith.andi %198, %200 : vector<1x128xi1>
        %202 = arith.ori %201, %162 : vector<1x128xi1>
        %c-2147483648_i32_70 = arith.constant -2147483648 : i32
        %203 = vector.broadcast %c-2147483648_i32_70 : i32 to vector<1x128xi32>
        %204 = arith.select %202, %203, %151 : vector<1x128xi1>, vector<1x128xi32>
        %205 = vector.broadcast %155 : i32 to vector<8x128xi32>
        %206 = arith.cmpi eq, %143, %205 : vector<8x128xi32>
        %207 = vector.broadcast %160 : i1 to vector<8x128xi1>
        %208 = arith.andi %206, %207 : vector<8x128xi1>
        %209 = vector.shape_cast %168 : vector<8x1xf32> to vector<8x1xf32>
        %210 = vector.broadcast %209 : vector<8x1xf32> to vector<8x128xf32>
        %211 = arith.select %208, %210, %153 : vector<8x128xi1>, vector<8x128xf32>
        %c4_i32_71 = arith.constant 4 : i32
        %212 = arith.muli %146, %c4_i32_71 : i32
        %c1_i32_72 = arith.constant 1 : i32
        %213 = arith.addi %212, %c1_i32_72 : i32
        %214 = vector.shape_cast %204 : vector<1x128xi32> to vector<1x1x128xi32>
        %cst_73 = arith.constant dense<-2147483648> : vector<1xi32>
        %215 = vector.multi_reduction <maxsi>, %214, %cst_73 [1, 2] : vector<1x1x128xi32> to vector<1xi32>
        %216 = vector.shape_cast %215 : vector<1xi32> to vector<1x1x1xi32>
        %217 = vector.extract %216[0, 0, 0] : i32 from vector<1x1x1xi32>
        %c-2147483648_i32_74 = arith.constant -2147483648 : i32
        %218 = arith.cmpi sgt, %217, %c-2147483648_i32_74 : i32
        %219 = vector.broadcast %217 : i32 to vector<1x128xi32>
        %220 = arith.cmpi eq, %204, %219 : vector<1x128xi32>
        %221 = arith.extui %220 : vector<1x128xi1> to vector<1x128xi32>
        %222 = arith.sitofp %221 : vector<1x128xi32> to vector<1x128xf32>
        %223 = vector.broadcast %222 : vector<1x128xf32> to vector<8x128xf32>
        %224 = arith.mulf %116, %223 : vector<8x128xf32>
        %cst_75 = arith.constant dense<0.000000e+00> : vector<8xf32>
        %225 = vector.multi_reduction <add>, %224, %cst_75 [1] : vector<8x128xf32> to vector<8xf32>
        %226 = vector.shape_cast %225 : vector<8xf32> to vector<8x1xf32>
        %227 = vector.extract_strided_slice %226 {offsets = [0, 0], sizes = [1, 1], strides = [1, 1]} : vector<8x1xf32> to vector<1x1xf32>
        %228 = vector.extract_strided_slice %226 {offsets = [1, 0], sizes = [1, 1], strides = [1, 1]} : vector<8x1xf32> to vector<1x1xf32>
        %229 = vector.extract_strided_slice %226 {offsets = [2, 0], sizes = [1, 1], strides = [1, 1]} : vector<8x1xf32> to vector<1x1xf32>
        %230 = vector.extract_strided_slice %226 {offsets = [3, 0], sizes = [1, 1], strides = [1, 1]} : vector<8x1xf32> to vector<1x1xf32>
        %231 = vector.extract_strided_slice %226 {offsets = [5, 0], sizes = [1, 1], strides = [1, 1]} : vector<8x1xf32> to vector<1x1xf32>
        %232 = vector.extract_strided_slice %226 {offsets = [6, 0], sizes = [1, 1], strides = [1, 1]} : vector<8x1xf32> to vector<1x1xf32>
        %233 = vector.broadcast %227 : vector<1x1xf32> to vector<1x128xf32>
        %234 = arith.maximumf %83, %233 : vector<1x128xf32>
        %235 = vector.broadcast %228 : vector<1x1xf32> to vector<1x128xf32>
        %236 = arith.maximumf %90, %235 : vector<1x128xf32>
        %237 = vector.broadcast %229 : vector<1x1xf32> to vector<1x128xf32>
        %238 = arith.minimumf %97, %237 : vector<1x128xf32>
        %239 = vector.broadcast %230 : vector<1x1xf32> to vector<1x128xf32>
        %240 = arith.minimumf %104, %239 : vector<1x128xf32>
        %241 = arith.subf %238, %234 : vector<1x128xf32>
        %cst_76 = arith.constant 0.000000e+00 : f32
        %242 = vector.broadcast %cst_76 : f32 to vector<1x128xf32>
        %243 = arith.maximumf %241, %242 : vector<1x128xf32>
        %244 = arith.subf %240, %236 : vector<1x128xf32>
        %cst_77 = arith.constant 0.000000e+00 : f32
        %245 = vector.broadcast %cst_77 : f32 to vector<1x128xf32>
        %246 = arith.maximumf %244, %245 : vector<1x128xf32>
        %247 = arith.mulf %243, %246 : vector<1x128xf32>
        %248 = vector.broadcast %232 : vector<1x1xf32> to vector<1x128xf32>
        %249 = arith.addf %108, %248 : vector<1x128xf32>
        %250 = arith.subf %249, %247 : vector<1x128xf32>
        %cst_78 = arith.constant 9.99999997E-7 : f32
        %251 = vector.broadcast %cst_78 : f32 to vector<1x128xf32>
        %252 = arith.maximumf %250, %251 : vector<1x128xf32>
        %253 = tpu.reciprocal %252 {approx = true} : vector<1x128xf32> -> vector<1x128xf32>
        %254 = arith.mulf %247, %253 : vector<1x128xf32>
        %cst_79 = arith.constant 5.000000e-01 : f32
        %255 = vector.broadcast %cst_79 : f32 to vector<1x128xf32>
        %256 = arith.cmpf ogt, %254, %255 : vector<1x128xf32>
        %257 = vector.broadcast %231 : vector<1x1xf32> to vector<1x128xf32>
        %258 = arith.cmpf oeq, %105, %257 : vector<1x128xf32>
        %259 = arith.andi %256, %258 : vector<1x128xi1>
        %260 = arith.ori %259, %220 : vector<1x128xi1>
        %c-2147483648_i32_80 = arith.constant -2147483648 : i32
        %261 = vector.broadcast %c-2147483648_i32_80 : i32 to vector<1x128xi32>
        %262 = arith.select %260, %261, %204 : vector<1x128xi1>, vector<1x128xi32>
        %263 = vector.broadcast %213 : i32 to vector<8x128xi32>
        %264 = arith.cmpi eq, %143, %263 : vector<8x128xi32>
        %265 = vector.broadcast %218 : i1 to vector<8x128xi1>
        %266 = arith.andi %264, %265 : vector<8x128xi1>
        %267 = vector.shape_cast %226 : vector<8x1xf32> to vector<8x1xf32>
        %268 = vector.broadcast %267 : vector<8x1xf32> to vector<8x128xf32>
        %269 = arith.select %266, %268, %211 : vector<8x128xi1>, vector<8x128xf32>
        %c4_i32_81 = arith.constant 4 : i32
        %270 = arith.muli %146, %c4_i32_81 : i32
        %c2_i32_82 = arith.constant 2 : i32
        %271 = arith.addi %270, %c2_i32_82 : i32
        %272 = vector.shape_cast %262 : vector<1x128xi32> to vector<1x1x128xi32>
        %cst_83 = arith.constant dense<-2147483648> : vector<1xi32>
        %273 = vector.multi_reduction <maxsi>, %272, %cst_83 [1, 2] : vector<1x1x128xi32> to vector<1xi32>
        %274 = vector.shape_cast %273 : vector<1xi32> to vector<1x1x1xi32>
        %275 = vector.extract %274[0, 0, 0] : i32 from vector<1x1x1xi32>
        %c-2147483648_i32_84 = arith.constant -2147483648 : i32
        %276 = arith.cmpi sgt, %275, %c-2147483648_i32_84 : i32
        %277 = vector.broadcast %275 : i32 to vector<1x128xi32>
        %278 = arith.cmpi eq, %262, %277 : vector<1x128xi32>
        %279 = arith.extui %278 : vector<1x128xi1> to vector<1x128xi32>
        %280 = arith.sitofp %279 : vector<1x128xi32> to vector<1x128xf32>
        %281 = vector.broadcast %280 : vector<1x128xf32> to vector<8x128xf32>
        %282 = arith.mulf %116, %281 : vector<8x128xf32>
        %cst_85 = arith.constant dense<0.000000e+00> : vector<8xf32>
        %283 = vector.multi_reduction <add>, %282, %cst_85 [1] : vector<8x128xf32> to vector<8xf32>
        %284 = vector.shape_cast %283 : vector<8xf32> to vector<8x1xf32>
        %285 = vector.extract_strided_slice %284 {offsets = [0, 0], sizes = [1, 1], strides = [1, 1]} : vector<8x1xf32> to vector<1x1xf32>
        %286 = vector.extract_strided_slice %284 {offsets = [1, 0], sizes = [1, 1], strides = [1, 1]} : vector<8x1xf32> to vector<1x1xf32>
        %287 = vector.extract_strided_slice %284 {offsets = [2, 0], sizes = [1, 1], strides = [1, 1]} : vector<8x1xf32> to vector<1x1xf32>
        %288 = vector.extract_strided_slice %284 {offsets = [3, 0], sizes = [1, 1], strides = [1, 1]} : vector<8x1xf32> to vector<1x1xf32>
        %289 = vector.extract_strided_slice %284 {offsets = [5, 0], sizes = [1, 1], strides = [1, 1]} : vector<8x1xf32> to vector<1x1xf32>
        %290 = vector.extract_strided_slice %284 {offsets = [6, 0], sizes = [1, 1], strides = [1, 1]} : vector<8x1xf32> to vector<1x1xf32>
        %291 = vector.broadcast %285 : vector<1x1xf32> to vector<1x128xf32>
        %292 = arith.maximumf %83, %291 : vector<1x128xf32>
        %293 = vector.broadcast %286 : vector<1x1xf32> to vector<1x128xf32>
        %294 = arith.maximumf %90, %293 : vector<1x128xf32>
        %295 = vector.broadcast %287 : vector<1x1xf32> to vector<1x128xf32>
        %296 = arith.minimumf %97, %295 : vector<1x128xf32>
        %297 = vector.broadcast %288 : vector<1x1xf32> to vector<1x128xf32>
        %298 = arith.minimumf %104, %297 : vector<1x128xf32>
        %299 = arith.subf %296, %292 : vector<1x128xf32>
        %cst_86 = arith.constant 0.000000e+00 : f32
        %300 = vector.broadcast %cst_86 : f32 to vector<1x128xf32>
        %301 = arith.maximumf %299, %300 : vector<1x128xf32>
        %302 = arith.subf %298, %294 : vector<1x128xf32>
        %cst_87 = arith.constant 0.000000e+00 : f32
        %303 = vector.broadcast %cst_87 : f32 to vector<1x128xf32>
        %304 = arith.maximumf %302, %303 : vector<1x128xf32>
        %305 = arith.mulf %301, %304 : vector<1x128xf32>
        %306 = vector.broadcast %290 : vector<1x1xf32> to vector<1x128xf32>
        %307 = arith.addf %108, %306 : vector<1x128xf32>
        %308 = arith.subf %307, %305 : vector<1x128xf32>
        %cst_88 = arith.constant 9.99999997E-7 : f32
        %309 = vector.broadcast %cst_88 : f32 to vector<1x128xf32>
        %310 = arith.maximumf %308, %309 : vector<1x128xf32>
        %311 = tpu.reciprocal %310 {approx = true} : vector<1x128xf32> -> vector<1x128xf32>
        %312 = arith.mulf %305, %311 : vector<1x128xf32>
        %cst_89 = arith.constant 5.000000e-01 : f32
        %313 = vector.broadcast %cst_89 : f32 to vector<1x128xf32>
        %314 = arith.cmpf ogt, %312, %313 : vector<1x128xf32>
        %315 = vector.broadcast %289 : vector<1x1xf32> to vector<1x128xf32>
        %316 = arith.cmpf oeq, %105, %315 : vector<1x128xf32>
        %317 = arith.andi %314, %316 : vector<1x128xi1>
        %318 = arith.ori %317, %278 : vector<1x128xi1>
        %c-2147483648_i32_90 = arith.constant -2147483648 : i32
        %319 = vector.broadcast %c-2147483648_i32_90 : i32 to vector<1x128xi32>
        %320 = arith.select %318, %319, %262 : vector<1x128xi1>, vector<1x128xi32>
        %321 = vector.broadcast %271 : i32 to vector<8x128xi32>
        %322 = arith.cmpi eq, %143, %321 : vector<8x128xi32>
        %323 = vector.broadcast %276 : i1 to vector<8x128xi1>
        %324 = arith.andi %322, %323 : vector<8x128xi1>
        %325 = vector.shape_cast %284 : vector<8x1xf32> to vector<8x1xf32>
        %326 = vector.broadcast %325 : vector<8x1xf32> to vector<8x128xf32>
        %327 = arith.select %324, %326, %269 : vector<8x128xi1>, vector<8x128xf32>
        %c4_i32_91 = arith.constant 4 : i32
        %328 = arith.muli %146, %c4_i32_91 : i32
        %c3_i32 = arith.constant 3 : i32
        %329 = arith.addi %328, %c3_i32 : i32
        %330 = vector.shape_cast %320 : vector<1x128xi32> to vector<1x1x128xi32>
        %cst_92 = arith.constant dense<-2147483648> : vector<1xi32>
        %331 = vector.multi_reduction <maxsi>, %330, %cst_92 [1, 2] : vector<1x1x128xi32> to vector<1xi32>
        %332 = vector.shape_cast %331 : vector<1xi32> to vector<1x1x1xi32>
        %333 = vector.extract %332[0, 0, 0] : i32 from vector<1x1x1xi32>
        %c-2147483648_i32_93 = arith.constant -2147483648 : i32
        %334 = arith.cmpi sgt, %333, %c-2147483648_i32_93 : i32
        %335 = vector.broadcast %333 : i32 to vector<1x128xi32>
        %336 = arith.cmpi eq, %320, %335 : vector<1x128xi32>
        %337 = arith.extui %336 : vector<1x128xi1> to vector<1x128xi32>
        %338 = arith.sitofp %337 : vector<1x128xi32> to vector<1x128xf32>
        %339 = vector.broadcast %338 : vector<1x128xf32> to vector<8x128xf32>
        %340 = arith.mulf %116, %339 : vector<8x128xf32>
        %cst_94 = arith.constant dense<0.000000e+00> : vector<8xf32>
        %341 = vector.multi_reduction <add>, %340, %cst_94 [1] : vector<8x128xf32> to vector<8xf32>
        %342 = vector.shape_cast %341 : vector<8xf32> to vector<8x1xf32>
        %343 = vector.extract_strided_slice %342 {offsets = [0, 0], sizes = [1, 1], strides = [1, 1]} : vector<8x1xf32> to vector<1x1xf32>
        %344 = vector.extract_strided_slice %342 {offsets = [1, 0], sizes = [1, 1], strides = [1, 1]} : vector<8x1xf32> to vector<1x1xf32>
        %345 = vector.extract_strided_slice %342 {offsets = [2, 0], sizes = [1, 1], strides = [1, 1]} : vector<8x1xf32> to vector<1x1xf32>
        %346 = vector.extract_strided_slice %342 {offsets = [3, 0], sizes = [1, 1], strides = [1, 1]} : vector<8x1xf32> to vector<1x1xf32>
        %347 = vector.extract_strided_slice %342 {offsets = [5, 0], sizes = [1, 1], strides = [1, 1]} : vector<8x1xf32> to vector<1x1xf32>
        %348 = vector.extract_strided_slice %342 {offsets = [6, 0], sizes = [1, 1], strides = [1, 1]} : vector<8x1xf32> to vector<1x1xf32>
        %349 = vector.broadcast %343 : vector<1x1xf32> to vector<1x128xf32>
        %350 = arith.maximumf %83, %349 : vector<1x128xf32>
        %351 = vector.broadcast %344 : vector<1x1xf32> to vector<1x128xf32>
        %352 = arith.maximumf %90, %351 : vector<1x128xf32>
        %353 = vector.broadcast %345 : vector<1x1xf32> to vector<1x128xf32>
        %354 = arith.minimumf %97, %353 : vector<1x128xf32>
        %355 = vector.broadcast %346 : vector<1x1xf32> to vector<1x128xf32>
        %356 = arith.minimumf %104, %355 : vector<1x128xf32>
        %357 = arith.subf %354, %350 : vector<1x128xf32>
        %cst_95 = arith.constant 0.000000e+00 : f32
        %358 = vector.broadcast %cst_95 : f32 to vector<1x128xf32>
        %359 = arith.maximumf %357, %358 : vector<1x128xf32>
        %360 = arith.subf %356, %352 : vector<1x128xf32>
        %cst_96 = arith.constant 0.000000e+00 : f32
        %361 = vector.broadcast %cst_96 : f32 to vector<1x128xf32>
        %362 = arith.maximumf %360, %361 : vector<1x128xf32>
        %363 = arith.mulf %359, %362 : vector<1x128xf32>
        %364 = vector.broadcast %348 : vector<1x1xf32> to vector<1x128xf32>
        %365 = arith.addf %108, %364 : vector<1x128xf32>
        %366 = arith.subf %365, %363 : vector<1x128xf32>
        %cst_97 = arith.constant 9.99999997E-7 : f32
        %367 = vector.broadcast %cst_97 : f32 to vector<1x128xf32>
        %368 = arith.maximumf %366, %367 : vector<1x128xf32>
        %369 = tpu.reciprocal %368 {approx = true} : vector<1x128xf32> -> vector<1x128xf32>
        %370 = arith.mulf %363, %369 : vector<1x128xf32>
        %cst_98 = arith.constant 5.000000e-01 : f32
        %371 = vector.broadcast %cst_98 : f32 to vector<1x128xf32>
        %372 = arith.cmpf ogt, %370, %371 : vector<1x128xf32>
        %373 = vector.broadcast %347 : vector<1x1xf32> to vector<1x128xf32>
        %374 = arith.cmpf oeq, %105, %373 : vector<1x128xf32>
        %375 = arith.andi %372, %374 : vector<1x128xi1>
        %376 = arith.ori %375, %336 : vector<1x128xi1>
        %c-2147483648_i32_99 = arith.constant -2147483648 : i32
        %377 = vector.broadcast %c-2147483648_i32_99 : i32 to vector<1x128xi32>
        %378 = arith.select %376, %377, %320 : vector<1x128xi1>, vector<1x128xi32>
        %379 = vector.broadcast %329 : i32 to vector<8x128xi32>
        %380 = arith.cmpi eq, %143, %379 : vector<8x128xi32>
        %381 = vector.broadcast %334 : i1 to vector<8x128xi1>
        %382 = arith.andi %380, %381 : vector<8x128xi1>
        %383 = vector.shape_cast %342 : vector<8x1xf32> to vector<8x1xf32>
        %384 = vector.broadcast %383 : vector<8x1xf32> to vector<8x128xf32>
        %385 = arith.select %382, %384, %327 : vector<8x128xi1>, vector<8x128xf32>
        %c0_100 = arith.constant 0 : index
        %c0_101 = arith.constant 0 : index
        %386 = vector.load %arg5[%c0_100, %c0_101] : memref<1x128xi32, #tpu.memory_space<vmem>>, vector<1x128xi32>
        tpu.vector_store %arg5[%c0_100, %c0_101], %378 {strides = array<i32>} : memref<1x128xi32, #tpu.memory_space<vmem>>, vector<1x128xi32>,
        %c0_102 = arith.constant 0 : index
        %c0_103 = arith.constant 0 : index
        %c0_104 = arith.constant 0 : index
        %387 = vector.load %arg4[%c0_102, %c0_103, %c0_104] : memref<1x8x128xf32, #tpu.memory_space<vmem>>, vector<1x8x128xf32>
        %388 = vector.shape_cast %387 : vector<1x8x128xf32> to vector<8x128xf32>
        %389 = vector.shape_cast %385 : vector<8x128xf32> to vector<1x8x128xf32>
        tpu.vector_store %arg4[%c0_102, %c0_103, %c0_104], %389 {strides = array<i32>} : memref<1x8x128xf32, #tpu.memory_space<vmem>>, vector<1x8x128xf32>,
        %390 = arith.extui %334 : i1 to i32
        %c0_105 = arith.constant 0 : index
        %391 = memref.load %arg6[%c0_105] : memref<1xi32, #tpu.memory_space<smem>>
        memref.store %390, %arg6[%c0_105] : memref<1xi32, #tpu.memory_space<smem>>
      } else {
      }
    }
    %c2_i32_50 = arith.constant 2 : i32
    return
  }
  func.func @transform_0(%arg0: i32) -> (i32, i32, i32) {
    %c0_i32 = arith.constant 0 : i32
    %c0_i32_0 = arith.constant 0 : i32
    %c0_i32_1 = arith.constant 0 : i32
    return %arg0, %c0_i32, %c0_i32_0 : i32, i32, i32
  }
  func.func @transform_1(%arg0: i32) -> (i32, i32, i32) {
    %c0_i32 = arith.constant 0 : i32
    %c0_i32_0 = arith.constant 0 : i32
    %c0_i32_1 = arith.constant 0 : i32
    return %arg0, %c0_i32, %c0_i32_0 : i32, i32, i32
  }
  func.func @transform_2(%arg0: i32) -> (i32, i32, i32) {
    %c0_i32 = arith.constant 0 : i32
    %c0_i32_0 = arith.constant 0 : i32
    %c0_i32_1 = arith.constant 0 : i32
    return %arg0, %c0_i32, %c0_i32_0 : i32, i32, i32
  }
  func.func @transform_3(%arg0: i32) -> (i32, i32, i32) {
    %c0_i32 = arith.constant 0 : i32
    %c0_i32_0 = arith.constant 0 : i32
    %c0_i32_1 = arith.constant 0 : i32
    return %arg0, %c0_i32, %c0_i32_0 : i32, i32, i32
  }
}

</mosaic_0001>

<llo_original>
// kernel: tpu_custom_call.1
$region0: #{tpu_custom_call.1}
  #allocation0 [shape = 'u32[]', space=smem, size = 0x4, offset = 0x4, fixed_abs, tag = 'smem constant byte address 0x4 - core index']
  #allocation1 [shape = 'u32[144,128]{1,0:T(1,128)}', space=vmem, size = 0x12000, scoped, tag = 'internal scratch']
  #allocation2 [shape = 's32[1,128]{1,0:T(1,128)}', space=vmem, size = 0x200, scoped, tag = 'scratch operand']
  #allocation3 [shape = 's32[1]{0:T(128)}', space=smem, size = 0x200, scoped, tag = 'scratch operand']
  %s0 = inlined_call_operand.vmem [shape: f32[2,4,128], index: 0, kind: input, shape index: {}]
  %s1 = inlined_call_operand.vmem [shape: f32[2,5,128], index: 1, kind: input, shape index: {}]
  %s2 = inlined_call_operand.vmem [shape: f32[2,20,128], index: 2, kind: input, shape index: {}]
  %s3 = inlined_call_operand.hbm [shape: f32[2,8,128], index: 3, kind: output, shape index: {}]
  %s4 = sld [smem:[#allocation0]]
  $region56: #{tpu_custom_call.1} parent=0
    _
  %s6 = ssub.s32 1, %s4
  %s7 = scalar_select 0, %s6, %s4
  $region1: #{tpu_custom_call.1} parent=0
    #allocation4 [shape = 'u8[8192]{0}', space=vmem, size = 0x2000, scoped, tag = 'output window, operand 0']
    #allocation5 [shape = 's32[2]{0}', space=sflag, size = 0x8, scoped, tag = 'scoped memory for tpu_custom_call.1']
    %8 = vsyncpa [#allocation5], 0
    %s9 = scalar_lea.sflag [#allocation5], 1
    %10 = vsyncpa %s9, 0
    loop: start=0, step=1, limit=4
    $region2: #{tpu_custom_call.1} parent=1 // loop_pre_header
      _
    $region3: #{tpu_custom_call.1} parent=1 // loop_header
      %s12 = sphi 0, %s16
      %p13 = scmp.ge.s32.totalorder %s12, 4
      %s22 = sphi 0, %s24
      %s25 = sphi 0, %s22
      %s26 = sphi 0, %s25
      %s42 = sphi 0, %s26
      %s48 = sphi 0, %s50
      %s51 = sphi 0, %s48
      %s52 = sphi 0, %s51
      %s68 = sphi 0, %s52
      %s74 = sphi 0, %s76
      %s77 = sphi 0, %s74
      %s78 = sphi 0, %s77
      %s94 = sphi 0, %s78
      %s100 = sphi 0, %s102
      %s103 = sphi 0, %s100
      %s104 = sphi 0, %s103
      %s120 = sphi 0, %s104
    $region4: #{tpu_custom_call.1} parent=1 // loop_header_branch
      %15 = sbr.rel (%p13) target = $region8
    $region5: #{tpu_custom_call.1} parent=1 // loop_body
      %s17 = ssub.s32 %s12, 1
      %s18 = ssub.s32 %s12, 2
      %s19 = sadd.s32 %s12, 1
      %s20 = ssub.s32 %s12, %s19
      %p21 = scmp.eq.s32.totalorder %s20, 0
      %s23 = sadd.s32 %s22, 1
      %s24 = scalar_select %p21, %s22, %s23
      %p27 = pneg %p21
      %p28 = scmp.eq.s32.totalorder %s12, 1
      %p29 = por %p27, %p28
      %p30 = scmp.ne.s32.totalorder %s22, %s25
      %p31 = scmp.eq.s32.totalorder %s12, 0
      %p32 = por %p30, %p31
      %p33 = scmp.ne.s32.totalorder %s22, %s25
      %p34 = scmp.eq.s32.totalorder %s17, 1
      %p35 = por %p33, %p34
      %p36 = scmp.ne.s32.totalorder %s25, %s26
      %p37 = scmp.eq.s32.totalorder %s17, 0
      %p38 = por %p36, %p37
      %p39 = scmp.ne.s32.totalorder %s25, %s26
      %p40 = scmp.eq.s32.totalorder %s18, 1
      %p41 = por %p39, %p40
      %p43 = scmp.ne.s32.totalorder %s26, %s42
      %p44 = scmp.eq.s32.totalorder %s18, 0
      %p45 = por %p43, %p44
      %s46 = ssub.s32 %s12, %s19
      %p47 = scmp.eq.s32.totalorder %s46, 0
      %s49 = sadd.s32 %s48, 1
      %s50 = scalar_select %p47, %s48, %s49
      %p53 = pneg %p47
      %p54 = scmp.eq.s32.totalorder %s12, 1
      %p55 = por %p53, %p54
      %p56 = scmp.ne.s32.totalorder %s48, %s51
      %p57 = scmp.eq.s32.totalorder %s12, 0
      %p58 = por %p56, %p57
      %p59 = scmp.ne.s32.totalorder %s48, %s51
      %p60 = scmp.eq.s32.totalorder %s17, 1
      %p61 = por %p59, %p60
      %p62 = scmp.ne.s32.totalorder %s51, %s52
      %p63 = scmp.eq.s32.totalorder %s17, 0
      %p64 = por %p62, %p63
      %p65 = scmp.ne.s32.totalorder %s51, %s52
      %p66 = scmp.eq.s32.totalorder %s18, 1
      %p67 = por %p65, %p66
      %p69 = scmp.ne.s32.totalorder %s52, %s68
      %p70 = scmp.eq.s32.totalorder %s18, 0
      %p71 = por %p69, %p70
      %s72 = ssub.s32 %s12, %s19
      %p73 = scmp.eq.s32.totalorder %s72, 0
      %s75 = sadd.s32 %s74, 1
      %s76 = scalar_select %p73, %s74, %s75
      %p79 = pneg %p73
      %p80 = scmp.eq.s32.totalorder %s12, 1
      %p81 = por %p79, %p80
      %p82 = scmp.ne.s32.totalorder %s74, %s77
      %p83 = scmp.eq.s32.totalorder %s12, 0
      %p84 = por %p82, %p83
      %p85 = scmp.ne.s32.totalorder %s74, %s77
      %p86 = scmp.eq.s32.totalorder %s17, 1
      %p87 = por %p85, %p86
      %p88 = scmp.ne.s32.totalorder %s77, %s78
      %p89 = scmp.eq.s32.totalorder %s17, 0
      %p90 = por %p88, %p89
      %p91 = scmp.ne.s32.totalorder %s77, %s78
      %p92 = scmp.eq.s32.totalorder %s18, 1
      %p93 = por %p91, %p92
      %p95 = scmp.ne.s32.totalorder %s78, %s94
      %p96 = scmp.eq.s32.totalorder %s18, 0
      %p97 = por %p95, %p96
      %s98 = ssub.s32 %s12, %s19
      %p99 = scmp.eq.s32.totalorder %s98, 0
      %s101 = sadd.s32 %s100, 1
      %s102 = scalar_select %p99, %s100, %s101
      %p105 = pneg %p99
      %p106 = scmp.eq.s32.totalorder %s12, 1
      %p107 = por %p105, %p106
      %p108 = scmp.ne.s32.totalorder %s100, %s103
      %p109 = scmp.eq.s32.totalorder %s12, 0
      %p110 = por %p108, %p109
      %p111 = scmp.ne.s32.totalorder %s100, %s103
      %p112 = scmp.eq.s32.totalorder %s17, 1
      %p113 = por %p111, %p112
      %p114 = scmp.ne.s32.totalorder %s103, %s104
      %p115 = scmp.eq.s32.totalorder %s17, 0
      %p116 = por %p114, %p115
      %p117 = scmp.ne.s32.totalorder %s103, %s104
      %p118 = scmp.eq.s32.totalorder %s18, 1
      %p119 = por %p117, %p118
      %p121 = scmp.ne.s32.totalorder %s104, %s120
      %p122 = scmp.eq.s32.totalorder %s18, 0
      %p123 = por %p121, %p122
      %p124 = scmp.le.s32.totalorder 1, %s12
      %p125 = scmp.lt.s32.totalorder %s12, 3
      %p126 = pnand %p124, %p125
      %p127 = pneg %p126
      // Predicated region
      $region9: #{tpu_custom_call.1} parent=5 // pred_check
        _
      $region10: #{tpu_custom_call.1} parent=5 // pred_check_branch
        %129 = sbr.rel (%p126) target = $region12
      $region11: #{tpu_custom_call.1} parent=5 // pred_region
        %s130 = ssub.s32 %s12, 1
      $region12: #{tpu_custom_call.1} parent=5 // pred_fallthru
        _
      %p131 = scmp.lt.s32.totalorder %s12, 2
      // Predicated region
      $region13: #{tpu_custom_call.1} parent=5 // pred_check
        %p132 = pneg %p131
      $region14: #{tpu_custom_call.1} parent=5 // pred_check_branch
        %134 = sbr.rel (%p132) target = $region16
      $region15: #{tpu_custom_call.1} parent=5 // pred_region
        // Predicated region
        $region17: #{tpu_custom_call.1} parent=15 // pred_check
          %p135 = pneg %p32
        $region18: #{tpu_custom_call.1} parent=15 // pred_check_branch
          %137 = sbr.rel (%p135) target = $region20
        $region19: #{tpu_custom_call.1} parent=15 // pred_region
          %p138 = scmp.lt.s32.totalorder %s12, 1
          %s139 = scalar_select %p138, %s12, 1
          %s140 = smul.addr %s139, 4
          %s141 = scalar_lea.vmem %s0, %s140
        $region20: #{tpu_custom_call.1} parent=15 // pred_fallthru
          _
        // Predicated region
        $region21: #{tpu_custom_call.1} parent=15 // pred_check
          %p142 = pneg %p58
        $region22: #{tpu_custom_call.1} parent=15 // pred_check_branch
          %144 = sbr.rel (%p142) target = $region24
        $region23: #{tpu_custom_call.1} parent=15 // pred_region
          %p145 = scmp.lt.s32.totalorder %s12, 1
          %s146 = scalar_select %p145, %s12, 1
          %s147 = smul.addr %s146, 8
          %s148 = scalar_lea.vmem %s1, %s147
        $region24: #{tpu_custom_call.1} parent=15 // pred_fallthru
          _
        // Predicated region
        $region25: #{tpu_custom_call.1} parent=15 // pred_check
          %p149 = pneg %p84
        $region26: #{tpu_custom_call.1} parent=15 // pred_check_branch
          %151 = sbr.rel (%p149) target = $region28
        $region27: #{tpu_custom_call.1} parent=15 // pred_region
          %p152 = scmp.lt.s32.totalorder %s12, 1
          %s153 = scalar_select %p152, %s12, 1
          %s154 = smul.addr %s153, 3
          %s155 = smul.addr %s154, 8
          %s156 = scalar_lea.vmem %s2, %s155
        $region28: #{tpu_custom_call.1} parent=15 // pred_fallthru
          _
      $region16: #{tpu_custom_call.1} parent=5 // pred_fallthru
        _
      %p157 = scmp.le.s32.totalorder 1, %s12
      %p158 = scmp.lt.s32.totalorder %s12, 3
      %p159 = pnand %p157, %p158
      %p160 = pneg %p159
      // Predicated region
      $region29: #{tpu_custom_call.1} parent=5 // pred_check
        _
      $region30: #{tpu_custom_call.1} parent=5 // pred_check_branch
        %162 = sbr.rel (%p159) target = $region32
      $region31: #{tpu_custom_call.1} parent=5 // pred_region
        %s163 = ssub.s32 %s12, 1
        %p164 = scmp.lt.s32.totalorder %s17, 1
        %s165 = scalar_select %p164, %s17, 1
        %s166 = smul.addr %s165, 4
        %s167 = scalar_lea.vmem %s0, %s166
        %p168 = pneg %p38
        %p169 = pneg %p35
        %p170 = scmp.lt.s32.totalorder %s17, 1
        %s171 = scalar_select %p170, %s17, 1
        %s172 = smul.addr %s171, 8
        %s173 = scalar_lea.vmem %s1, %s172
        %p174 = pneg %p64
        %p175 = pneg %p61
        %p176 = scmp.lt.s32.totalorder %s17, 1
        %s177 = scalar_select %p176, %s17, 1
        %s178 = smul.addr %s177, 3
        %s179 = smul.addr %s178, 8
        %s180 = scalar_lea.vmem %s2, %s179
        %p181 = pneg %p90
        %p182 = pneg %p87
        %p183 = pneg %p116
        %p184 = pneg %p113
        %s185 = sand.u32 %s103, 1
        %s186 = scalar_lea.sflag [#allocation5], %s185
        %s187 = sand.u32 %s103, 1
        %s188 = smul.addr %s187, 8
        %s189 = scalar_lea.vmem [#allocation4], %s188
        %p190 = scmp.lt.s32.totalorder %s17, 1
        %s191 = scalar_select %p190, %s17, 1
        %s192 = smul.addr %s191, 4
        %s193 = scalar_lea.vmem %s0, %s192
        %p194 = scmp.lt.s32.totalorder %s17, 1
        %s195 = scalar_select %p194, %s17, 1
        %s196 = smul.addr %s195, 8
        %s197 = scalar_lea.vmem %s1, %s196
        %p198 = scmp.lt.s32.totalorder %s17, 1
        %s199 = scalar_select %p198, %s17, 1
        %s200 = smul.addr %s199, 3
        %s201 = smul.addr %s200, 8
        %s202 = scalar_lea.vmem %s2, %s201
        %v203 = vld [vmem:[%s193] sm:$0xf]
        %v204 = vmul.f32 %v203, 0.25
        %v205 = vld [vmem:[%s197] sm:$0x1f]
        %v206 = vld [vmem:[%s202] sm:$0xff]
        %v207 = vld [vmem:[%s202 + $0x8] sm:$0xff]
        %v208 = vld [vmem:[%s202 + $0x10] sm:$0xf]
        %vm209 = vcmask 1044481
        %v210 = vsel %vm209, %v205, -inf
        %v211 = vrot.slane %v210, 4
        %v212 = vmax.f32 %v210, %v211
        %v213 = vrot.slane %v212, 2
        %v214 = vmax.f32 %v212, %v213
        %v215 = vrot.slane %v214, 1
        %v216 = vmax.f32 %v214, %v215
        %v217 = vlaneseq
        %v218 = vshrl.u32 %v217, 7
        %vm219 = vcmp.ge.f32.partialorder %v205, %v216
        %v220 = vrot.slane %v218, 7
        %v221 = vsel %vm219, %v220, 4
        %v222 = vsel %vm209, %v221, 2147483647
        %v223 = vrot.slane %v222, 4
        %vm224 = vcmp.lt.s32.totalorder %v222, %v223
        %v225 = vsel %vm224, %v222, %v223
        %v226 = vrot.slane %v225, 2
        %vm227 = vcmp.lt.s32.totalorder %v225, %v226
        %v228 = vsel %vm227, %v225, %v226
        %v229 = vrot.slane %v228, 1
        %vm230 = vcmp.lt.s32.totalorder %v228, %v229
        %v231 = vsel %vm230, %v228, %v229
        %v232 = vadd.s32 %v231, 1
        %vm233 = vcmp.eq.s32.totalorder %v218, %v232
        %v234 = vsel %vm233, 1, 0
        %v235 = vcvt.s32.f32 %v234
        %v236 = vmul.f32 %v206, %v235
        %vm237 = vcmask 1044480
        %v238 = vsel %vm237, %v236, 0.0
        %v239 = vrot.slane %v238, 4
        %v240 = vadd.f32 %v238, %v239
        %v241 = vrot.slane %v240, 2
        %v242 = vadd.f32 %v240, %v241
        %v243 = vrot.slane %v242, 1
        %v244 = vadd.f32 %v242, %v243
        %v245 = vmul.f32 %v244, 0.1
        %v246 = vadd.f32 %v245, 0.0
        %v248 = vrot.slane %v235, 3
        %v250 = vmul.f32 %v206, %v248
        %v251 = vmul.f32 %v207, %v248
        %vm254 = vcmask 1042432
        %v255 = vrot.slane %v250, 5
        %v256 = vrot.slane %v251, 5
        %v257 = vsel %vm254, %v255, %v256
        %v259 = vsel %vm237, %v257, 0.0
        %v260 = vrot.slane %v259, 4
        %v261 = vadd.f32 %v259, %v260
        %v262 = vrot.slane %v261, 2
        %v263 = vadd.f32 %v261, %v262
        %v264 = vrot.slane %v263, 1
        %v265 = vadd.f32 %v263, %v264
        %v266 = vmul.f32 %v265, 0.1
        %v267 = vadd.f32 %v266, 0.0
        %v268 = vrot.slane %v235, 6
        %v270 = vmul.f32 %v207, %v268
        %v272 = vrot.slane %v270, 2
        %v274 = vsel %vm237, %v272, 0.0
        %v275 = vrot.slane %v274, 4
        %v276 = vadd.f32 %v274, %v275
        %v277 = vrot.slane %v276, 2
        %v278 = vadd.f32 %v276, %v277
        %v279 = vrot.slane %v278, 1
        %v280 = vadd.f32 %v278, %v279
        %v281 = vmul.f32 %v280, 0.2
        %v282 = vadd.f32 %v281, 0.0
        %v283 = vrot.slane %v235, 1
        %v285 = vmul.f32 %v207, %v283
        %v286 = vmul.f32 %v208, %v283
        %vm289 = vcmask 1040384
        %v290 = vrot.slane %v285, 7
        %v291 = vrot.slane %v286, 7
        %v292 = vsel %vm289, %v290, %v291
        %v294 = vsel %vm237, %v292, 0.0
        %v295 = vrot.slane %v294, 4
        %v296 = vadd.f32 %v294, %v295
        %v297 = vrot.slane %v296, 2
        %v298 = vadd.f32 %v296, %v297
        %v299 = vrot.slane %v298, 1
        %v300 = vadd.f32 %v298, %v299
        %v301 = vmul.f32 %v300, 0.2
        %v302 = vadd.f32 %v301, 0.0
        %v304 = vrot.slane %v204, 6
        %v306 = vsub.f32 %v204, %v304
        %v307 = vmul.f32 %v306, 0.5
        %v309 = vrot.slane %v307, 2
        %v311 = vadd.f32 %v204, %v309
        %v312 = vmul.f32 %v246, %v306
        %v314 = vrot.slane %v311, 6
        %v316 = vadd.f32 %v312, %v314
        %v317 = vmul.f32 %v267, %v306
        %v318 = vadd.f32 %v317, %v314
        %v319 = vmul.f32 %v282, 1.442695
        %v320 = vpow.pop %v319
        %v321 = vmul.f32 %v320, %v306
        %v322 = vmul.f32 %v302, 1.442695
        %v323 = vpow.pop %v322
        %v324 = vmul.f32 %v323, %v306
        %v325 = vmul.f32 %v321, 0.5
        %v326 = vsub.f32 %v316, %v325
        %v327 = vmax.f32 %v326, 0.0
        %v328 = vmin.f32 %v327, 127.0
        %v329 = vmul.f32 %v324, 0.5
        %v330 = vsub.f32 %v318, %v329
        %v331 = vmax.f32 %v330, 0.0
        %v332 = vmin.f32 %v331, 127.0
        %v333 = vadd.f32 %v316, %v325
        %v334 = vmax.f32 %v333, 0.0
        %v335 = vmin.f32 %v334, 127.0
        %v336 = vadd.f32 %v318, %v329
        %v337 = vmax.f32 %v336, 0.0
        %v338 = vmin.f32 %v337, 127.0
        %v339 = vcvt.s32.f32 %v231
        %v340 = vsub.f32 %v335, %v328
        %v341 = vsub.f32 %v338, %v332
        %v343 = vrot.slane %v341, 1
        %v345 = vmul.f32 %v340, %v343
        %v346 = vlaneseq
        %v347 = vand.u32 %v346, 127
        %vm348 = vcmp.ge.f32.partialorder %v216, 0.05
        %vm349 = vcmp.lt.s32.totalorder %v347, 32
        %vm350 = vmand %vm348, %vm349
        %v352 = vrot.slane %v328, 2
        %v355 = vrot.slane %v332, 2
        %v358 = vrot.slane %v345, 4
        %v360 = vsel %vm289, %v352, %v355
        %vm361 = vcmask 1041408
        %v362 = vsel %vm361, %v360, %v335
        %v363 = vsel %vm254, %v362, %v338
        %vm364 = vcmask 1043456
        %v365 = vsel %vm364, %v363, %v216
        %v366 = vsel %vm237, %v365, %v339
        %vm367 = vcmask 1045504
        %v368 = vsel %vm367, %v366, %v358
        %vm369 = vcmask 1046528
        %v370 = vsel %vm369, %v368, 0.0
        %vm372 = vcmp.lt.s32.totalorder %v216, 0
        %v373 = vsel %vm372, 2147483647, 0
        %v374 = vxor.u32 %v216, %v373
        %v375 = vand.u32 %v374, 4294967168
        %v376 = vsub.s32 127, %v347
        %v377 = vor.u32 %v375, %v376
        %v378 = vsel %vm350, %v377, 2147483648
        %379 = vst [vmem:[#allocation2] sm:$0x1] %v378
        %v380 = vand.u32 %v378, 65535
        %v381 = vshra.s32 %v378, 16
        %v382 = vcvt.s32.f32 %v380
        %v383 = vcvt.s32.f32 %v381
        %384 = vmax.xlane.f32.xlu0 %v383
        %v385 = vpop.xlane.xlu0 %384
        %vm386 = vcmp.eq.f32.partialorder %v383, %v385
        %v387 = vsel %vm386, %v382, -inf
        %388 = vmax.xlane.f32.xlu0 %v387
        %v389 = vpop.xlane.xlu0 %388
        %v390 = vcvt.f32.s32 %v389
        %v391 = vcvt.f32.s32 %v385
        %v392 = vshll.u32 %v391, 16
        %v393 = vadd.s32 %v392, %v390
        %s394 = vtos %v393
        %p395 = scmp.gt.s32.totalorder %s394, 2147483648
        %s396 = scalar_select %p395, 1, 0
        %s397 = scalar_lea.smem [#allocation3], 0
        %398 = sst [smem:[%s397]] %s396
        %399 = vst [vmem:[%s189] sm:$0xff] -1.0
        loop: start=0, step=1, limit=2
        $region33: #{tpu_custom_call.1} parent=31 // loop_pre_header
          _
        $region34: #{tpu_custom_call.1} parent=31 // loop_header
          %s401 = sphi 0, %s405
          %p402 = scmp.ge.s32.totalorder %s401, 2
        $region35: #{tpu_custom_call.1} parent=31 // loop_header_branch
          %404 = sbr.rel (%p402) target = $region39
        $region36: #{tpu_custom_call.1} parent=31 // loop_body
          %s406 = sld [smem:[#allocation3]]
          %p407 = scmp.gt.s32.totalorder %s406, 0
          // Predicated region
          $region40: #{tpu_custom_call.1} parent=36 // pred_check
            %p408 = pneg %p407
          $region41: #{tpu_custom_call.1} parent=36 // pred_check_branch
            %410 = sbr.rel (%p408) target = $region43
          $region42: #{tpu_custom_call.1} parent=36 // pred_region
            %v411 = vld [vmem:[#allocation2] sm:$0x1]
            %v412 = vld [vmem:[%s189] sm:$0xff]
            %s413 = smul.u32 %s401, 4
            %v414 = vsel %vm289, %v411, 2147483648
            %v415 = vand.u32 %v414, 65535
            %v416 = vshra.s32 %v414, 16
            %v417 = vcvt.s32.f32 %v415
            %v418 = vcvt.s32.f32 %v416
            %419 = vmax.xlane.f32.xlu0 %v418
            %v420 = vpop.xlane.xlu0 %419
            %vm421 = vcmp.eq.f32.partialorder %v418, %v420
            %v422 = vsel %vm421, %v417, -inf
            %423 = vmax.xlane.f32.xlu0 %v422
            %v424 = vpop.xlane.xlu0 %423
            %v425 = vcvt.f32.s32 %v424
            %v426 = vcvt.f32.s32 %v420
            %v427 = vshll.u32 %v426, 16
            %v428 = vadd.s32 %v427, %v425
            %v429 = vrot.slane %v428, 4
            %vm430 = vcmp.gt.s32.totalorder %v428, %v429
            %v431 = vsel %vm430, %v428, %v429
            %v432 = vrot.slane %v431, 2
            %vm433 = vcmp.gt.s32.totalorder %v431, %v432
            %v434 = vsel %vm433, %v431, %v432
            %v435 = vrot.slane %v434, 1
            %vm436 = vcmp.gt.s32.totalorder %v434, %v435
            %v437 = vsel %vm436, %v434, %v435
            %s438 = vtos %v437
            %p439 = scmp.gt.s32.totalorder %s438, 2147483648
            %v440 = vstv %s438
            %vm441 = vcmp.eq.s32.totalorder %v411, %v440
            %v442 = vsel %vm441, 1, 0
            %v443 = vcvt.s32.f32 %v442
            %v445 = vlaneseq
            %v446 = vshrl.u32 %v445, 7
            %v447 = vsub.s32 0, %v446
            %v448 = vrot.slane %v443, %v447
            %v450 = vmul.f32 %v370, %v448
            %451 = vadd.xlane.f32.xlu0 %v450
            %v452 = vpop.xlane.xlu0 %451
            %v454 = vrot.slane %v452, 6
            %v456 = vmax.f32 %v328, %v454
            %v457 = vmax.f32 %v332, %v454
            %v458 = vmin.f32 %v335, %v452
            %v459 = vmin.f32 %v338, %v452
            %v460 = vsub.f32 %v458, %v456
            %v461 = vmax.f32 %v460, 0.0
            %v462 = vsub.f32 %v459, %v457
            %v463 = vmax.f32 %v462, 0.0
            %v465 = vrot.slane %v463, 1
            %v467 = vmul.f32 %v461, %v465
            %v468 = vrot.slane %v452, 4
            %v470 = vadd.f32 %v345, %v468
            %v471 = vsub.f32 %v470, %v467
            %v472 = vmax.f32 %v471, 1e-06
            %v473 = vrcp.pop %v472
            %v474 = vmul.f32 %v467, %v473
            %vm475 = vcmp.gt.f32.partialorder %v474, 0.5
            %vm476 = vcmp.eq.f32.partialorder %v339, %v452
            %v477 = vsel %vm476, 1, 0
            %v478 = vrot.slane %v477, 3
            %vm479 = vcmp.ne.s32.totalorder %v478, 0
            %vm480 = vmand %vm475, %vm479
            %v481 = vlaneseq
            %v482 = vshrl.u32 %v481, 7
            %v483 = vsub.s32 0, %v482
            %v484 = vrot.slane %v442, %v483
            %vm485 = vcmp.ne.s32.totalorder %v484, 0
            %vm486 = vmor %vm480, %vm485
            %v487 = vlaneseq
            %v488 = vshrl.u32 %v487, 7
            %v489 = vsub.s32 0, %v488
            %v490 = vrot.slane %v411, %v489
            %v491 = vsel %vm486, 2147483648, %v490
            %v492 = vstv %s413
            %vm493 = vcmp.eq.s32.totalorder %v347, %v492
            %s494 = scalar_select %p439, 1, 0
            %v495 = vstv %s494
            %vm496 = vcmp.eq.s32.totalorder %v495, 1
            %vm497 = vmand %vm493, %vm496
            %v498 = vsel %vm497, %v452, %v412
            %s499 = sadd.s32 %s413, 1
            %vm500 = vcmask 1042434
            %v501 = vsel %vm500, %v491, 2147483648
            %v502 = vand.u32 %v501, 65535
            %v503 = vshra.s32 %v501, 16
            %v504 = vcvt.s32.f32 %v502
            %v505 = vcvt.s32.f32 %v503
            %506 = vmax.xlane.f32.xlu0 %v505
            %v507 = vpop.xlane.xlu0 %506
            %vm508 = vcmp.eq.f32.partialorder %v505, %v507
            %v509 = vsel %vm508, %v504, -inf
            %510 = vmax.xlane.f32.xlu0 %v509
            %v511 = vpop.xlane.xlu0 %510
            %v512 = vcvt.f32.s32 %v511
            %v513 = vcvt.f32.s32 %v507
            %v514 = vshll.u32 %v513, 16
            %v515 = vadd.s32 %v514, %v512
            %v516 = vrot.slane %v515, 4
            %vm517 = vcmp.gt.s32.totalorder %v515, %v516
            %v518 = vsel %vm517, %v515, %v516
            %v519 = vrot.slane %v518, 2
            %vm520 = vcmp.gt.s32.totalorder %v518, %v519
            %v521 = vsel %vm520, %v518, %v519
            %v522 = vrot.slane %v521, 1
            %vm523 = vcmp.gt.s32.totalorder %v521, %v522
            %v524 = vsel %vm523, %v521, %v522
            %s525 = vtos %v524
            %p526 = scmp.gt.s32.totalorder %s525, 2147483648
            %v527 = vstv %s525
            %vm528 = vcmp.eq.s32.totalorder %v491, %v527
            %v529 = vsel %vm528, 1, 0
            %v530 = vcvt.s32.f32 %v529
            %v531 = vlaneseq
            %v532 = vshrl.u32 %v531, 7
            %v533 = vsub.s32 2, %v532
            %v534 = vrot.slane %v530, %v533
            %v535 = vmul.f32 %v370, %v534
            %536 = vadd.xlane.f32.xlu0 %v535
            %v537 = vpop.xlane.xlu0 %536
            %v539 = vrot.slane %v537, 6
            %v541 = vmax.f32 %v328, %v539
            %v542 = vmax.f32 %v332, %v539
            %v543 = vmin.f32 %v335, %v537
            %v544 = vmin.f32 %v338, %v537
            %v545 = vsub.f32 %v543, %v541
            %v546 = vmax.f32 %v545, 0.0
            %v547 = vsub.f32 %v544, %v542
            %v548 = vmax.f32 %v547, 0.0
            %v550 = vrot.slane %v548, 1
            %v552 = vmul.f32 %v546, %v550
            %v553 = vrot.slane %v537, 4
            %v555 = vadd.f32 %v345, %v553
            %v556 = vsub.f32 %v555, %v552
            %v557 = vmax.f32 %v556, 1e-06
            %v558 = vrcp.pop %v557
            %v559 = vmul.f32 %v552, %v558
            %vm560 = vcmp.gt.f32.partialorder %v559, 0.5
            %vm561 = vcmp.eq.f32.partialorder %v339, %v537
            %v562 = vsel %vm561, 1, 0
            %v563 = vrot.slane %v562, 3
            %vm564 = vcmp.ne.s32.totalorder %v563, 0
            %vm565 = vmand %vm560, %vm564
            %vm566 = vmor %vm565, %vm528
            %v567 = vsel %vm566, 2147483648, %v491
            %v568 = vstv %s499
            %vm569 = vcmp.eq.s32.totalorder %v347, %v568
            %s570 = scalar_select %p526, 1, 0
            %v571 = vstv %s570
            %vm572 = vcmp.eq.s32.totalorder %v571, 1
            %vm573 = vmand %vm569, %vm572
            %v574 = vsel %vm573, %v537, %v498
            %s575 = sadd.s32 %s413, 2
            %v576 = vsel %vm500, %v567, 2147483648
            %v577 = vand.u32 %v576, 65535
            %v578 = vshra.s32 %v576, 16
            %v579 = vcvt.s32.f32 %v577
            %v580 = vcvt.s32.f32 %v578
            %581 = vmax.xlane.f32.xlu0 %v580
            %v582 = vpop.xlane.xlu0 %581
            %vm583 = vcmp.eq.f32.partialorder %v580, %v582
            %v584 = vsel %vm583, %v579, -inf
            %585 = vmax.xlane.f32.xlu0 %v584
            %v586 = vpop.xlane.xlu0 %585
            %v587 = vcvt.f32.s32 %v586
            %v588 = vcvt.f32.s32 %v582
            %v589 = vshll.u32 %v588, 16
            %v590 = vadd.s32 %v589, %v587
            %v591 = vrot.slane %v590, 4
            %vm592 = vcmp.gt.s32.totalorder %v590, %v591
            %v593 = vsel %vm592, %v590, %v591
            %v594 = vrot.slane %v593, 2
            %vm595 = vcmp.gt.s32.totalorder %v593, %v594
            %v596 = vsel %vm595, %v593, %v594
            %v597 = vrot.slane %v596, 1
            %vm598 = vcmp.gt.s32.totalorder %v596, %v597
            %v599 = vsel %vm598, %v596, %v597
            %s600 = vtos %v599
            %p601 = scmp.gt.s32.totalorder %s600, 2147483648
            %v602 = vstv %s600
            %vm603 = vcmp.eq.s32.totalorder %v567, %v602
            %v604 = vsel %vm603, 1, 0
            %v605 = vcvt.s32.f32 %v604
            %v606 = vlaneseq
            %v607 = vshrl.u32 %v606, 7
            %v608 = vsub.s32 2, %v607
            %v609 = vrot.slane %v605, %v608
            %v610 = vmul.f32 %v370, %v609
            %611 = vadd.xlane.f32.xlu0 %v610
            %v612 = vpop.xlane.xlu0 %611
            %v614 = vrot.slane %v612, 6
            %v616 = vmax.f32 %v328, %v614
            %v617 = vmax.f32 %v332, %v614
            %v618 = vmin.f32 %v335, %v612
            %v619 = vmin.f32 %v338, %v612
            %v620 = vsub.f32 %v618, %v616
            %v621 = vmax.f32 %v620, 0.0
            %v622 = vsub.f32 %v619, %v617
            %v623 = vmax.f32 %v622, 0.0
            %v625 = vrot.slane %v623, 1
            %v627 = vmul.f32 %v621, %v625
            %v628 = vrot.slane %v612, 4
            %v630 = vadd.f32 %v345, %v628
            %v631 = vsub.f32 %v630, %v627
            %v632 = vmax.f32 %v631, 1e-06
            %v633 = vrcp.pop %v632
            %v634 = vmul.f32 %v627, %v633
            %vm635 = vcmp.gt.f32.partialorder %v634, 0.5
            %vm636 = vcmp.eq.f32.partialorder %v339, %v612
            %v637 = vsel %vm636, 1, 0
            %v638 = vrot.slane %v637, 3
            %vm639 = vcmp.ne.s32.totalorder %v638, 0
            %vm640 = vmand %vm635, %vm639
            %vm641 = vmor %vm640, %vm603
            %v642 = vsel %vm641, 2147483648, %v567
            %v643 = vstv %s575
            %vm644 = vcmp.eq.s32.totalorder %v347, %v643
            %s645 = scalar_select %p601, 1, 0
            %v646 = vstv %s645
            %vm647 = vcmp.eq.s32.totalorder %v646, 1
            %vm648 = vmand %vm644, %vm647
            %v649 = vsel %vm648, %v612, %v574
            %s650 = sadd.s32 %s413, 3
            %v651 = vsel %vm500, %v642, 2147483648
            %v652 = vand.u32 %v651, 65535
            %v653 = vshra.s32 %v651, 16
            %v654 = vcvt.s32.f32 %v652
            %v655 = vcvt.s32.f32 %v653
            %656 = vmax.xlane.f32.xlu0 %v655
            %v657 = vpop.xlane.xlu0 %656
            %vm658 = vcmp.eq.f32.partialorder %v655, %v657
            %v659 = vsel %vm658, %v654, -inf
            %660 = vmax.xlane.f32.xlu0 %v659
            %v661 = vpop.xlane.xlu0 %660
            %v662 = vcvt.f32.s32 %v661
            %v663 = vcvt.f32.s32 %v657
            %v664 = vshll.u32 %v663, 16
            %v665 = vadd.s32 %v664, %v662
            %v666 = vrot.slane %v665, 4
            %vm667 = vcmp.gt.s32.totalorder %v665, %v666
            %v668 = vsel %vm667, %v665, %v666
            %v669 = vrot.slane %v668, 2
            %vm670 = vcmp.gt.s32.totalorder %v668, %v669
            %v671 = vsel %vm670, %v668, %v669
            %v672 = vrot.slane %v671, 1
            %vm673 = vcmp.gt.s32.totalorder %v671, %v672
            %v674 = vsel %vm673, %v671, %v672
            %s675 = vtos %v674
            %p676 = scmp.gt.s32.totalorder %s675, 2147483648
            %v677 = vstv %s675
            %vm678 = vcmp.eq.s32.totalorder %v642, %v677
            %v679 = vsel %vm678, 1, 0
            %v680 = vcvt.s32.f32 %v679
            %v681 = vlaneseq
            %v682 = vshrl.u32 %v681, 7
            %v683 = vsub.s32 2, %v682
            %v684 = vrot.slane %v680, %v683
            %v685 = vmul.f32 %v370, %v684
            %686 = vadd.xlane.f32.xlu0 %v685
            %v687 = vpop.xlane.xlu0 %686
            %v689 = vrot.slane %v687, 6
            %v691 = vmax.f32 %v328, %v689
            %v692 = vmax.f32 %v332, %v689
            %v693 = vmin.f32 %v335, %v687
            %v694 = vmin.f32 %v338, %v687
            %v695 = vsub.f32 %v693, %v691
            %v696 = vmax.f32 %v695, 0.0
            %v697 = vsub.f32 %v694, %v692
            %v698 = vmax.f32 %v697, 0.0
            %v700 = vrot.slane %v698, 1
            %v702 = vmul.f32 %v696, %v700
            %v703 = vrot.slane %v687, 4
            %v705 = vadd.f32 %v345, %v703
            %v706 = vsub.f32 %v705, %v702
            %v707 = vmax.f32 %v706, 1e-06
            %v708 = vrcp.pop %v707
            %v709 = vmul.f32 %v702, %v708
            %vm710 = vcmp.gt.f32.partialorder %v709, 0.5
            %vm711 = vcmp.eq.f32.partialorder %v339, %v687
            %v712 = vsel %vm711, 1, 0
            %v713 = vrot.slane %v712, 3
            %vm714 = vcmp.ne.s32.totalorder %v713, 0
            %vm715 = vmand %vm710, %vm714
            %vm716 = vmor %vm715, %vm678
            %v717 = vsel %vm716, 2147483648, %v642
            %v718 = vstv %s650
            %vm719 = vcmp.eq.s32.totalorder %v347, %v718
            %s720 = scalar_select %p676, 1, 0
            %v721 = vstv %s720
            %vm722 = vcmp.eq.s32.totalorder %v721, 1
            %vm723 = vmand %vm719, %vm722
            %v724 = vsel %vm723, %v687, %v649
            %725 = vst [vmem:[#allocation2 - $0x2] sm:$0x4] %v717
            %726 = vst [vmem:[%s189] sm:$0xff] %v724
            %727 = sst [smem:[%s397]] %s720
          $region43: #{tpu_custom_call.1} parent=36 // pred_fallthru
            _
        $region37: #{tpu_custom_call.1} parent=31 // loop_footer
          %s405 = sadd.s32 1, %s401
        $region38: #{tpu_custom_call.1} parent=31 // loop_footer_branch
          %400 = sbr.rel target = $region34
        $region39: #{tpu_custom_call.1} parent=31 // loop_exit
          _
        %s728 = sand.u32 %s103, 1
        %s729 = scalar_lea.sflag [#allocation5], %s728
        %s730 = sand.u32 %s103, 1
        %s731 = smul.addr %s730, 8
        %s732 = scalar_lea.vmem [#allocation4], %s731
        // Predicated region
        $region44: #{tpu_custom_call.1} parent=31 // pred_check
          %p733 = pneg %p113
        $region45: #{tpu_custom_call.1} parent=31 // pred_check_branch
          %735 = sbr.rel (%p733) target = $region47
        $region46: #{tpu_custom_call.1} parent=31 // pred_region
          %s737 = ssub.s32 128, 128
          %738 = vsyncadd %s729, %s737
          %s739 = smul.addr %s17, 128
          %s740 = scalar_lea.hbm %s3, %s739
          %s742 = sshll.u32 %s732, 4
          %s743 = int_to_ptr.vmem [resolvable:$true] %s742
          %745 = dma.vmem_to_hbm [thread:$0]  %s743, 128, %s740, %s729
        $region47: #{tpu_custom_call.1} parent=31 // pred_fallthru
          _
      $region32: #{tpu_custom_call.1} parent=5 // pred_fallthru
        _
      %p746 = scmp.le.s32.totalorder 2, %s12
      // Predicated region
      $region48: #{tpu_custom_call.1} parent=5 // pred_check
        %p747 = pneg %p746
      $region49: #{tpu_custom_call.1} parent=5 // pred_check_branch
        %749 = sbr.rel (%p747) target = $region51
      $region50: #{tpu_custom_call.1} parent=5 // pred_region
        %s750 = ssub.s32 %s12, 2
        // Predicated region
        $region52: #{tpu_custom_call.1} parent=50 // pred_check
          %p751 = pneg %p119
        $region53: #{tpu_custom_call.1} parent=50 // pred_check_branch
          %753 = sbr.rel (%p751) target = $region55
        $region54: #{tpu_custom_call.1} parent=50 // pred_region
          %s754 = sand.u32 %s104, 1
          %s755 = scalar_lea.sflag [#allocation5], %s754
          %s756 = sand.u32 %s104, 1
          %s757 = smul.addr %s756, 8
          %s758 = scalar_lea.vmem [#allocation4], %s757
          %759 = dma.done %s755, 128
        $region55: #{tpu_custom_call.1} parent=50 // pred_fallthru
          _
      $region51: #{tpu_custom_call.1} parent=5 // pred_fallthru
        _
    $region6: #{tpu_custom_call.1} parent=1 // loop_footer
      %s16 = sadd.s32 1, %s12
    $region7: #{tpu_custom_call.1} parent=1 // loop_footer_branch
      %11 = sbr.rel target = $region3
    $region8: #{tpu_custom_call.1} parent=1 // loop_exit
      _
    %760 = vsyncpa [#allocation5], 1
    %s761 = scalar_lea.sflag [#allocation5], 1
    %762 = vsyncpa %s761, 1

</llo_original>
